<compile_context>
chip_gen: v5e
topology: v5e:2x2
jax: 0.10.0
libtpu: 0.0.40
codegen_flags: <defaults>
</compile_context>

<pallas_src>
import functools

import jax
import jax.numpy as jnp
from jax.experimental import pallas as pl
from jax.experimental.pallas import tpu as pltpu


def _round_up(x, m):
    return (x + m - 1) // m * m


def _vmem_limit_bytes():
    """Scoped VMEM limit: ~3/4 of physical, capped at 112 MiB (v5e/v6e 128 MiB
    -> 96 MiB, v7x 64 MiB -> 48 MiB)."""
    cap = 64 * 1024 * 1024
    try:
        info = pltpu.get_tpu_info()
        cap = int(getattr(info, "vmem_capacity_bytes", cap)) or cap
    except Exception:
        pass
    return int(min(cap * 3 // 4, 112 * 1024 * 1024))


def _pick_tile(n, d, elem_bytes, vmem_budget, full_output):
    """Largest lane-dense tile whose double-buffered slabs + output block fit."""
    n128 = _round_up(max(int(n), 1), 128)
    for tile in (512, 256, 128):
        if tile > n128:
            continue
        if _round_up(n, tile) > n128 + tile // 2:
            continue  # too much padding waste for mid-sized n
        slabs = 2 * 2 * tile * d * elem_bytes            # row+col slabs, 2x buffered
        outb = 2 * (tile * tile * 4 if full_output else 8 * 128 * 4)
        norms = 2 * 2 * tile * 4
        if slabs + outb + norms <= int(vmem_budget * 0.8):
            return tile
    # TODO(synk): for very large d where even tile=128 slabs exceed VMEM, add a
    # third "arbitrary" grid axis over the feature dim with a VMEM Gram
    # accumulator (init/finalize via pl.when).
    return 128


# ----------------------------------------------------------------------------
# In-kernel helpers
# ----------------------------------------------------------------------------
def _multi_gauss(d2, coef_ref, kernel_num, use_squaring):
    """sum_k exp(coef_k * d2) with coef_k = -1/bw_k read from SMEM."""
    if use_squaring:
        # kernel_mul == 2  =>  coef_k = 2 * coef_{k+1}: compute the weakest
        # exponential once on the EUP and derive the rest by VPU squaring.
        e = jnp.exp(d2 * coef_ref[kernel_num - 1])
        acc = e
        for _ in range(kernel_num - 1):
            e = e * e
            acc = acc + e
        return acc
    acc = jnp.exp(d2 * coef_ref[0])
    for k in range(1, kernel_num):
        acc = acc + jnp.exp(d2 * coef_ref[k])
    return acc


def _gauss_block(coef_ref, xr_ref, xc_ref, rr_ref, rc_ref, kernel_num,
                 use_squaring):
    # Gram block on the MXU (operands in their slab dtype, f32 accumulate).
    gram = jax.lax.dot_general(
        xr_ref[...], xc_ref[...],
        (((1,), (1,)), ((), ())),                 # xr @ xc^T
        preferred_element_type=jnp.float32)        # (TILE, TILE) f32
    # d2 = ||x_i||^2 + ||x_j||^2 - 2 <x_i, x_j>, clamped (cancellation guard).
    d2 = jnp.maximum(rr_ref[...] + rc_ref[...] - 2.0 * gram, 0.0)
    return _multi_gauss(d2, coef_ref, kernel_num, use_squaring)


# ----------------------------------------------------------------------------
# Pallas kernels
# ----------------------------------------------------------------------------
def _kernel_matrix_kernel(coef_ref, xr_ref, xc_ref, rr_ref, rc_ref, out_ref, *,
                          kernel_num, use_squaring):
    out_ref[...] = _gauss_block(coef_ref, xr_ref, xc_ref, rr_ref, rc_ref,
                                kernel_num, use_squaring)


def _mmd_partial_kernel(coef_ref, xr_ref, xc_ref, rr_ref, rc_ref, out_ref, *,
                        kernel_num, use_squaring, tile, n, b):
    """Fused MMD: per-block weighted partial sum (no (N, N) materialization)."""
    kvals = _gauss_block(coef_ref, xr_ref, xc_ref, rr_ref, rc_ref,
                         kernel_num, use_squaring)
    m = n - b
    row = (pl.program_id(0) * tile
           + jax.lax.broadcasted_iota(jnp.int32, (tile, tile), 0))
    col = (pl.program_id(1) * tile
           + jax.lax.broadcasted_iota(jnp.int32, (tile, tile), 1))
    row_src = row < b
    col_src = col < b
    # +mean(XX) +mean(YY) -mean(XY) -mean(YX) folded into per-element weights.
    w_src_row = jnp.where(col_src, 1.0 / (b * b), -1.0 / (b * m))
    w_tgt_row = jnp.where(col_src, -1.0 / (b * m), 1.0 / (m * m))
    w = jnp.where(row_src, w_src_row, w_tgt_row)
    w = jnp.where((row < n) & (col < n), w, 0.0)   # mask padded rows/cols
    partial = jnp.sum(kvals * w)
    # Broadcast into the (8,128) output block; the wrapper divides by 1024.
    out_ref[...] = jnp.full((8, 128), partial, dtype=jnp.float32)


# ----------------------------------------------------------------------------
# Shared wrapper prep: concat, center, pad, norms, bandwidth, coefficients
# ----------------------------------------------------------------------------
def _prepare(source, target, kernel_mul, kernel_num, fix_sigma, gram_dtype,
             full_output):
    total = jnp.concatenate([source, target], axis=0).astype(jnp.float32)
    n, d = int(total.shape[0]), int(total.shape[1])

    # Mean-center: pairwise distances are invariant, removes f32 cancellation
    # in the analytic bandwidth and in rr + rc - 2*gram.
    total = total - jnp.mean(total, axis=0, keepdims=True)

    if gram_dtype is None:
        gram_dtype = jnp.bfloat16 if (n >= 1024 or d >= 2048) else jnp.float32
    gram_dtype = jnp.dtype(gram_dtype)

    vmem_limit = _vmem_limit_bytes()
    tile = _pick_tile(n, d, gram_dtype.itemsize, vmem_limit, full_output)
    n_pad = _round_up(n, tile)
    if n_pad != n:
        total = jnp.pad(total, ((0, n_pad - n), (0, 0)))   # zero pad rows

    tot_gram = total.astype(gram_dtype)           # MXU slab operands
    totf = tot_gram.astype(jnp.float32)           # consistent with the Gram
    sq = jnp.sum(totf * totf, axis=1)             # (n_pad,) row squared norms

    # bandwidth = sum(L2_distance) / (n^2 - n), computed analytically from an
    # O(N*d) reduction (zero pad rows contribute nothing).
    # NOTE: `if fix_sigma:` requires a static Python scalar (mirrors PyTorch).
    if fix_sigma:
        bandwidth = jnp.float32(fix_sigma)
    else:
        col_sum = jnp.sum(totf, axis=0)
        sum_l2 = 2.0 * n * jnp.sum(sq) - 2.0 * jnp.sum(col_sum * col_sum)
        bandwidth = sum_l2 / float(n * n - n)

    base = bandwidth / (kernel_mul ** (kernel_num // 2))
    mults = jnp.asarray([kernel_mul ** i for i in range(kernel_num)],
                        jnp.float32)
    coeffs = (-1.0 / (base * mults)).astype(jnp.float32)   # (kernel_num,) SMEM

    sq_col = sq.reshape(n_pad, 1)
    sq_row = sq.reshape(1, n_pad)
    use_squaring = (float(kernel_mul) == 2.0)

    return (tot_gram, sq_col, sq_row, coeffs, n, n_pad, d, tile,
            use_squaring, vmem_limit, gram_dtype)


def _in_specs(tile, d):
    return [
        pl.BlockSpec(memory_space=pltpu.MemorySpace.SMEM),        # coeffs
        pl.BlockSpec((tile, d), lambda i, j: (i, 0)),             # row slab
        pl.BlockSpec((tile, d), lambda i, j: (j, 0)),             # col slab
        pl.BlockSpec((tile, 1), lambda i, j: (i, 0)),             # ||x_i||^2
        pl.BlockSpec((1, tile), lambda i, j: (0, j)),             # ||x_j||^2
    ]


# ----------------------------------------------------------------------------
# Public wrappers
# ----------------------------------------------------------------------------
def multi_gaussian_kernel(source, target, kernel_mul=2.0, kernel_num=5,
                          fix_sigma=None, gram_dtype=None):
    """Full (N, N) multi-bandwidth Gaussian kernel over cat([source, target])."""
    (tot, sq_col, sq_row, coeffs, n, n_pad, d, tile, use_sq, vmem_limit,
     gdt) = _prepare(source, target, kernel_mul, kernel_num, fix_sigma,
                     gram_dtype, full_output=True)
    grid = (n_pad // tile, n_pad // tile)
    kern = functools.partial(_kernel_matrix_kernel, kernel_num=kernel_num,
                             use_squaring=use_sq)
    cost = pl.CostEstimate(
        flops=int(2 * n_pad * n_pad * d + 10 * n_pad * n_pad),
        transcendentals=int(n_pad * n_pad * (1 if use_sq else kernel_num)),
        bytes_accessed=int(2 * grid[0] * n_pad * d * gdt.itemsize
                           + n_pad * n_pad * 4))
    out = pl.pallas_call(
        kern,
        out_shape=jax.ShapeDtypeStruct((n_pad, n_pad), jnp.float32),
        grid=grid,
        in_specs=_in_specs(tile, d),
        out_specs=pl.BlockSpec((tile, tile), lambda i, j: (i, j)),
        compiler_params=pltpu.CompilerParams(
            dimension_semantics=("parallel", "parallel"),
            vmem_limit_bytes=vmem_limit),
        cost_estimate=cost,
    )(coeffs, tot, tot, sq_col, sq_row)
    return out[:n, :n]


def mmd_rbf_loss(source, target, kernel_mul=2.0, kernel_num=5, fix_sigma=None,
                 gram_dtype=None):
    """MMD loss (rbf_mmd) fully fused: no (N, N) kernel-matrix materialization."""
    b = int(source.shape[0])
    (tot, sq_col, sq_row, coeffs, n, n_pad, d, tile, use_sq, vmem_limit,
     gdt) = _prepare(source, target, kernel_mul, kernel_num, fix_sigma,
                     gram_dtype, full_output=False)
    grid = (n_pad // tile, n_pad // tile)
    kern = functools.partial(_mmd_partial_kernel, kernel_num=kernel_num,
                             use_squaring=use_sq, tile=tile, n=n, b=b)
    cost = pl.CostEstimate(
        flops=int(2 * n_pad * n_pad * d + 14 * n_pad * n_pad),
        transcendentals=int(n_pad * n_pad * (1 if use_sq else kernel_num)),
        bytes_accessed=int(2 * grid[0] * n_pad * d * gdt.itemsize
                           + grid[0] * grid[1] * 8 * 128 * 4))
    partials = pl.pallas_call(
        kern,
        out_shape=jax.ShapeDtypeStruct((grid[0] * 8, grid[1] * 128),
                                       jnp.float32),
        grid=grid,
        in_specs=_in_specs(tile, d),
        out_specs=pl.BlockSpec((8, 128), lambda i, j: (i, j)),
        compiler_params=pltpu.CompilerParams(
            dimension_semantics=("parallel", "parallel"),
            vmem_limit_bytes=vmem_limit),
        cost_estimate=cost,
    )(coeffs, tot, tot, sq_col, sq_row)
    # Each block stored its scalar partial broadcast over (8,128).
    return jnp.sum(partials) * (1.0 / 1024.0)


# ----------------------------------------------------------------------------
# MMD_loss module (forward semantics of the PyTorch spec)
# ----------------------------------------------------------------------------
class MMDLoss:
    def __init__(self, kernel_type='rbf', kernel_mul=2.0, kernel_num=5,
                 eplison=0.001, fix_sigma=None, **kwargs):
        self.kernel_num = kernel_num
        self.kernel_mul = kernel_mul
        self.fix_sigma = None          # PyTorch __init__ ignores fix_sigma kwarg
        self.kernel_type = kernel_type
        self.eplison = eplison

    def guassian_kernel(self, source, target):
        return multi_gaussian_kernel(source, target,
                                     kernel_mul=self.kernel_mul,
                                     kernel_num=self.kernel_num,
                                     fix_sigma=self.fix_sigma)

    def linear_mmd2(self, f_of_X, f_of_Y):
        delta = (jnp.mean(f_of_X.astype(jnp.float32), axis=0)
                 - jnp.mean(f_of_Y.astype(jnp.float32), axis=0))
        return jnp.dot(delta, delta)

    def rbf_mmd(self, source, target):
        # Fused Pallas path: kernel emits per-block weighted partial sums.
        return mmd_rbf_loss(source, target, kernel_mul=self.kernel_mul,
                            kernel_num=self.kernel_num,
                            fix_sigma=self.fix_sigma)

    def rbf_cmmd(self, sX, tX, sY, tY):
        n1 = int(sX.shape[0])
        n2 = int(tX.shape[0])
        bsz = n1
        xk = self.guassian_kernel(sX, tX)
        yk = self.guassian_kernel(sY, tY)
        X11, X21, X22 = xk[:bsz, :bsz], xk[bsz:, :bsz], xk[bsz:, bsz:]
        Y11, Y12, Y22 = yk[:bsz, :bsz], yk[:bsz, bsz:], yk[bsz:, bsz:]
        # TODO(synk): torch.inverse/trace have no clean Pallas equivalent; the
        # tiny (batch x batch) inverses/traces are done with XLA linalg here.
        X11_inv = jnp.linalg.inv(X11 + self.eplison * n1
                                 * jnp.eye(n1, dtype=jnp.float32))
        X22_inv = jnp.linalg.inv(X22 + self.eplison * n2
                                 * jnp.eye(n2, dtype=jnp.float32))
        cmmd1 = -2.0 / (n1 * n2) * jnp.trace(X21 @ X11_inv @ Y12 @ X22_inv)
        cmmd2 = 1.0 / (n1 * n1) * jnp.trace(Y11 @ X11_inv)
        cmmd3 = 1.0 / (n2 * n2) * jnp.trace(Y22 @ X22_inv)
        return cmmd1 + cmmd2 + cmmd3

    def __call__(self, source, target, sourceY=None, targetY=None):
        if self.kernel_type == 'linear':
            return self.linear_mmd2(source, target)
        elif self.kernel_type == 'mmd':
            return self.rbf_mmd(source, target)
        elif self.kernel_type == 'cmmd':
            return self.rbf_cmmd(source, target, sourceY, targetY)
        return None                    # kernel_type='rbf' falls through in PyTorch


# ----------------------------------------------------------------------------
# Pure-JAX reference (mirrors the PyTorch broadcast-diff implementation)
# ----------------------------------------------------------------------------
def _ref_guassian_kernel(source, target, kernel_mul, kernel_num, fix_sigma):
    n_samples = source.shape[0] + target.shape[0]
    total = jnp.concatenate([source, target], axis=0).astype(jnp.float32)
    diff = total[None, :, :] - total[:, None, :]
    l2 = jnp.sum(diff * diff, axis=2)
    if fix_sigma:
        bandwidth = jnp.float32(fix_sigma)
    else:
        bandwidth = jnp.sum(l2) / float(n_samples ** 2 - n_samples)
    bandwidth = bandwidth / (kernel_mul ** (kernel_num // 2))
    vals = [jnp.exp(-l2 / (bandwidth * kernel_mul ** i))
            for i in range(kernel_num)]
    return sum(vals)


def _ref_rbf_mmd(source, target, kernel_mul, kernel_num):
    b = source.shape[0]
    k = _ref_guassian_kernel(source, target, kernel_mul, kernel_num, None)
    return (jnp.mean(k[:b, :b]) + jnp.mean(k[b:, b:])
            - jnp.mean(k[:b, b:]) - jnp.mean(k[b:, :b]))


if __name__ == "__main__":
    key = jax.random.PRNGKey(0)
    k1, k2 = jax.random.split(key)
    batch, feat = 8, 32                      # small test shapes (n * len(x))
    source = jax.random.normal(k1, (batch, feat), dtype=jnp.float32)
    target = jax.random.normal(k2, (batch, feat), dtype=jnp.float32) + 0.5

    # Reference path.
    kmat_ref = _ref_guassian_kernel(source, target, 2.0, 5, None)
    loss_ref = _ref_rbf_mmd(source, target, 2.0, 5)

    # Pallas full kernel matrix, f32 Gram path.
    kmat = jax.block_until_ready(
        multi_gaussian_kernel(source, target, kernel_mul=2.0, kernel_num=5,
                              gram_dtype=jnp.float32))
    assert kmat.shape == (2 * batch, 2 * batch)
    assert jnp.allclose(kmat, kmat_ref, atol=1e-4, rtol=1e-4)

    # Pallas full kernel matrix, bf16 Gram path (halved slab traffic).
    kmat_bf16 = jax.block_until_ready(
        multi_gaussian_kernel(source, target, kernel_mul=2.0, kernel_num=5,
                              gram_dtype=jnp.bfloat16))
    assert jnp.allclose(kmat_bf16, kmat_ref, atol=0.1, rtol=0.1)

    # Fused mmd loss (no N^2 materialization).
    loss_fn = MMDLoss(kernel_type='mmd', kernel_mul=2.0, kernel_num=5)
    loss = jax.block_until_ready(loss_fn(source, target))
    assert jnp.isfinite(loss)
    assert abs(float(loss) - float(loss_ref)) < 1e-4

    # cmmd path smoke test (inverses/traces stay in XLA).
    cmmd_fn = MMDLoss(kernel_type='cmmd', kernel_mul=2.0, kernel_num=5)
    sY = jax.random.normal(jax.random.PRNGKey(1), (batch, feat), jnp.float32)
    tY = jax.random.normal(jax.random.PRNGKey(2), (batch, feat), jnp.float32)
    cmmd = jax.block_until_ready(cmmd_fn(source, target, sY, tY))
    assert jnp.isfinite(cmmd)

    print("KERNEL_OK")
</pallas_src>

<mosaic_0001>
module attributes {stable_mosaic.version = 11 : i64} {
  func.func @_kernel_matrix_kernel(%arg0: i32, %arg1: i32, %arg2: memref<5xf32, #tpu.memory_space<smem>>, %arg3: memref<128x32xf32, #tpu.memory_space<vmem>>, %arg4: memref<128x32xf32, #tpu.memory_space<vmem>>, %arg5: memref<128x1xf32, #tpu.memory_space<vmem>>, %arg6: memref<1x128xf32, #tpu.memory_space<vmem>>, %arg7: memref<128x128xf32, #tpu.memory_space<vmem>>) attributes {dimension_semantics = [#tpu.dimension_semantics<parallel>, #tpu.dimension_semantics<parallel>], iteration_bounds = array<i64: 1, 1>, scalar_prefetch = 0 : i64, scratch_operands = 0 : i64, tpu.core_type = #tpu.core_type<tc>, window_params = [{transform_indices = @transform_0, window_bounds = array<i64: 5>}, {transform_indices = @transform_1, window_bounds = array<i64: 128, 32>}, {transform_indices = @transform_2, window_bounds = array<i64: 128, 32>}, {transform_indices = @transform_3, window_bounds = array<i64: 128, 1>}, {transform_indices = @transform_4, window_bounds = array<i64: 1, 128>}, {transform_indices = @transform_5, window_bounds = array<i64: 128, 128>}]} {
    %c0 = arith.constant 0 : index
    %c0_0 = arith.constant 0 : index
    %0 = vector.load %arg3[%c0, %c0_0] : memref<128x32xf32, #tpu.memory_space<vmem>>, vector<128x32xf32>
    %c0_1 = arith.constant 0 : index
    %c0_2 = arith.constant 0 : index
    %1 = vector.load %arg4[%c0_1, %c0_2] : memref<128x32xf32, #tpu.memory_space<vmem>>, vector<128x32xf32>
    %cst = arith.constant dense<0.000000e+00> : vector<128x128xf32>
    %2 = tpu.matmul %0, %1, %cst {dimension_numbers = #tpu.dot_dimension_numbers<[1], [1], [0], [0], [0, 0, 1, 0], [], []>} : vector<128x32xf32>, vector<128x32xf32>, vector<128x128xf32> -> vector<128x128xf32>
    %c0_3 = arith.constant 0 : index
    %c0_4 = arith.constant 0 : index
    %3 = vector.load %arg5[%c0_3, %c0_4] : memref<128x1xf32, #tpu.memory_space<vmem>>, vector<128x1xf32>
    %c0_5 = arith.constant 0 : index
    %c0_6 = arith.constant 0 : index
    %4 = vector.load %arg6[%c0_5, %c0_6] : memref<1x128xf32, #tpu.memory_space<vmem>>, vector<1x128xf32>
    %5 = vector.broadcast %3 : vector<128x1xf32> to vector<128x128xf32>
    %6 = vector.broadcast %4 : vector<1x128xf32> to vector<128x128xf32>
    %7 = arith.addf %5, %6 : vector<128x128xf32>
    %cst_7 = arith.constant 2.000000e+00 : f32
    %8 = vector.broadcast %cst_7 : f32 to vector<128x128xf32>
    %9 = arith.mulf %8, %2 : vector<128x128xf32>
    %10 = arith.subf %7, %9 : vector<128x128xf32>
    %cst_8 = arith.constant 0.000000e+00 : f32
    %11 = vector.broadcast %cst_8 : f32 to vector<128x128xf32>
    %12 = arith.maximumf %10, %11 : vector<128x128xf32>
    %c4 = arith.constant 4 : index
    %13 = memref.load %arg2[%c4] : memref<5xf32, #tpu.memory_space<smem>>
    %14 = vector.broadcast %13 : f32 to vector<128x128xf32>
    %15 = arith.mulf %12, %14 : vector<128x128xf32>
    %16 = math.exp %15 : vector<128x128xf32>
    %17 = arith.mulf %16, %16 : vector<128x128xf32>
    %18 = arith.addf %16, %17 : vector<128x128xf32>
    %19 = arith.mulf %17, %17 : vector<128x128xf32>
    %20 = arith.addf %18, %19 : vector<128x128xf32>
    %21 = arith.mulf %19, %19 : vector<128x128xf32>
    %22 = arith.addf %20, %21 : vector<128x128xf32>
    %23 = arith.mulf %21, %21 : vector<128x128xf32>
    %24 = arith.addf %22, %23 : vector<128x128xf32>
    %c0_9 = arith.constant 0 : index
    %c0_10 = arith.constant 0 : index
    %25 = vector.load %arg7[%c0_9, %c0_10] : memref<128x128xf32, #tpu.memory_space<vmem>>, vector<128x128xf32>
    tpu.vector_store %arg7[%c0_9, %c0_10], %24 {strides = array<i32>} : memref<128x128xf32, #tpu.memory_space<vmem>>, vector<128x128xf32>,
    return
  }
  func.func @transform_0(%arg0: i32, %arg1: i32) -> i32 {
    %c0_i32 = arith.constant 0 : i32
    %c0_i32_0 = arith.constant 0 : i32
    return %c0_i32 : i32
  }
  func.func @transform_1(%arg0: i32, %arg1: i32) -> (i32, i32) {
    %c0_i32 = arith.constant 0 : i32
    %c0_i32_0 = arith.constant 0 : i32
    return %arg0, %c0_i32 : i32, i32
  }
  func.func @transform_2(%arg0: i32, %arg1: i32) -> (i32, i32) {
    %c0_i32 = arith.constant 0 : i32
    %c0_i32_0 = arith.constant 0 : i32
    return %arg1, %c0_i32 : i32, i32
  }
  func.func @transform_3(%arg0: i32, %arg1: i32) -> (i32, i32) {
    %c0_i32 = arith.constant 0 : i32
    %c0_i32_0 = arith.constant 0 : i32
    return %arg0, %c0_i32 : i32, i32
  }
  func.func @transform_4(%arg0: i32, %arg1: i32) -> (i32, i32) {
    %c0_i32 = arith.constant 0 : i32
    %c0_i32_0 = arith.constant 0 : i32
    return %c0_i32, %arg1 : i32, i32
  }
  func.func @transform_5(%arg0: i32, %arg1: i32) -> (i32, i32) {
    %c0_i32 = arith.constant 0 : i32
    return %arg0, %arg1 : i32, i32
  }
}

</mosaic_0001>

<llo_original>
// kernel: tpu_custom_call.1
$region0: #{tpu_custom_call.1}
  #allocation0 [shape = 'u32[]', space=smem, size = 0x4, offset = 0x4, fixed_abs, tag = 'smem constant byte address 0x4 - core index']
  #allocation1 [shape = 'u32[72,128]{1,0:T(1,128)}', space=vmem, size = 0x9000, scoped, tag = 'internal scratch']
  %s0 = inlined_call_operand.vmem [shape: f32[5], index: 0, kind: input, shape index: {}]
  %s1 = inlined_call_operand.vmem [shape: f32[128,32], index: 1, kind: input, shape index: {}]
  %s2 = inlined_call_operand.vmem [shape: f32[128,32], index: 2, kind: input, shape index: {}]
  %s3 = inlined_call_operand.vmem [shape: f32[128,1], index: 3, kind: input, shape index: {}]
  %s4 = inlined_call_operand.vmem [shape: f32[1,128], index: 4, kind: input, shape index: {}]
  %s5 = inlined_call_operand.hbm [shape: f32[128,128], index: 5, kind: output, shape index: {}]
  %s6 = sld [smem:[#allocation0]]
  $region34: #{tpu_custom_call.1} parent=0
    _
  %s8 = ssub.s32 1, %s6
  %s9 = scalar_select 0, %s8, %s6
  $region1: #{tpu_custom_call.1} parent=0
    #allocation2 [shape = 'u8[512]{0}', space=smem, size = 0x200, scoped, tag = 'input window, operand 0, single buffered']
    #allocation3 [shape = 's32[1]{0}', space=sflag, size = 0x4, scoped, tag = 'scoped memory for tpu_custom_call.1']
    #allocation4 [shape = 's32[1]{0}', space=sflag, size = 0x4, scoped, tag = 'scoped memory for tpu_custom_call.1']
    #allocation5 [shape = 'u8[65536]{0}', space=vmem, size = 0x10000, scoped, tag = 'output window, operand 0, single buffered']
    %10 = vsyncpa [#allocation4], 0
    %11 = vsyncpa [#allocation3], 0
    // Predicated region
    $region2: #{tpu_custom_call.1} parent=1 // pred_check
      _
    $region3: #{tpu_custom_call.1} parent=1 // pred_check_branch
      %13 = sbr.rel (0) target = $region5
    $region4: #{tpu_custom_call.1} parent=1 // pred_region
      %15 = vsyncadd [#allocation4], 0
      %s17 = sshll.u32 %s0, 4
      %s18 = int_to_ptr.vmem [resolvable:$true] %s17
      %20 = dma.vmem_to_smem %s18, 16, [#allocation2], [#allocation4]
    $region5: #{tpu_custom_call.1} parent=1 // pred_fallthru
      _
    // Predicated region
    $region6: #{tpu_custom_call.1} parent=1 // pred_check
      _
    $region7: #{tpu_custom_call.1} parent=1 // pred_check_branch
      %22 = sbr.rel (0) target = $region9
    $region8: #{tpu_custom_call.1} parent=1 // pred_region
      _
    $region9: #{tpu_custom_call.1} parent=1 // pred_fallthru
      _
    // Predicated region
    $region10: #{tpu_custom_call.1} parent=1 // pred_check
      _
    $region11: #{tpu_custom_call.1} parent=1 // pred_check_branch
      %24 = sbr.rel (0) target = $region13
    $region12: #{tpu_custom_call.1} parent=1 // pred_region
      _
    $region13: #{tpu_custom_call.1} parent=1 // pred_fallthru
      _
    // Predicated region
    $region14: #{tpu_custom_call.1} parent=1 // pred_check
      _
    $region15: #{tpu_custom_call.1} parent=1 // pred_check_branch
      %26 = sbr.rel (0) target = $region17
    $region16: #{tpu_custom_call.1} parent=1 // pred_region
      _
    $region17: #{tpu_custom_call.1} parent=1 // pred_fallthru
      _
    // Predicated region
    $region18: #{tpu_custom_call.1} parent=1 // pred_check
      _
    $region19: #{tpu_custom_call.1} parent=1 // pred_check_branch
      %28 = sbr.rel (0) target = $region21
    $region20: #{tpu_custom_call.1} parent=1 // pred_region
      _
    $region21: #{tpu_custom_call.1} parent=1 // pred_fallthru
      _
    // Predicated region
    $region22: #{tpu_custom_call.1} parent=1 // pred_check
      _
    $region23: #{tpu_custom_call.1} parent=1 // pred_check_branch
      %30 = sbr.rel (0) target = $region25
    $region24: #{tpu_custom_call.1} parent=1 // pred_region
      %32 = dma.done [#allocation4], 16
    $region25: #{tpu_custom_call.1} parent=1 // pred_fallthru
      _
    %33 = sfence
    %v34 = vld [vmem:[%s1] sm:$0xff]
    %v35 = vld [vmem:[%s1 + $0x8] sm:$0xff]
    %v36 = vld [vmem:[%s1 + $0x10] sm:$0xff]
    %v37 = vld [vmem:[%s1 + $0x18] sm:$0xff]
    %v38 = vld [vmem:[%s1 + $0x20] sm:$0xff]
    %v39 = vld [vmem:[%s1 + $0x28] sm:$0xff]
    %v40 = vld [vmem:[%s1 + $0x30] sm:$0xff]
    %v41 = vld [vmem:[%s1 + $0x38] sm:$0xff]
    %v42 = vld [vmem:[%s1 + $0x40] sm:$0xff]
    %v43 = vld [vmem:[%s1 + $0x48] sm:$0xff]
    %v44 = vld [vmem:[%s1 + $0x50] sm:$0xff]
    %v45 = vld [vmem:[%s1 + $0x58] sm:$0xff]
    %v46 = vld [vmem:[%s1 + $0x60] sm:$0xff]
    %v47 = vld [vmem:[%s1 + $0x68] sm:$0xff]
    %v48 = vld [vmem:[%s1 + $0x70] sm:$0xff]
    %v49 = vld [vmem:[%s1 + $0x78] sm:$0xff]
    %v50 = vld [vmem:[%s2] sm:$0xff]
    %v51 = vld [vmem:[%s2 + $0x8] sm:$0xff]
    %v52 = vld [vmem:[%s2 + $0x10] sm:$0xff]
    %v53 = vld [vmem:[%s2 + $0x18] sm:$0xff]
    %v54 = vld [vmem:[%s2 + $0x20] sm:$0xff]
    %v55 = vld [vmem:[%s2 + $0x28] sm:$0xff]
    %v56 = vld [vmem:[%s2 + $0x30] sm:$0xff]
    %v57 = vld [vmem:[%s2 + $0x38] sm:$0xff]
    %v58 = vld [vmem:[%s2 + $0x40] sm:$0xff]
    %v59 = vld [vmem:[%s2 + $0x48] sm:$0xff]
    %v60 = vld [vmem:[%s2 + $0x50] sm:$0xff]
    %v61 = vld [vmem:[%s2 + $0x58] sm:$0xff]
    %v62 = vld [vmem:[%s2 + $0x60] sm:$0xff]
    %v63 = vld [vmem:[%s2 + $0x68] sm:$0xff]
    %v64 = vld [vmem:[%s2 + $0x70] sm:$0xff]
    %v65 = vld [vmem:[%s2 + $0x78] sm:$0xff]
    %vm66 = vcmask 261120
    %v68 = vsel %vm66, %v34, 0
    %v71 = vsel %vm66, %v35, 0
    %v74 = vsel %vm66, %v36, 0
    %v77 = vsel %vm66, %v37, 0
    %v80 = vsel %vm66, %v38, 0
    %v83 = vsel %vm66, %v39, 0
    %v86 = vsel %vm66, %v40, 0
    %v89 = vsel %vm66, %v41, 0
    %v92 = vsel %vm66, %v42, 0
    %v95 = vsel %vm66, %v43, 0
    %v98 = vsel %vm66, %v44, 0
    %v101 = vsel %vm66, %v45, 0
    %v104 = vsel %vm66, %v46, 0
    %v107 = vsel %vm66, %v47, 0
    %v110 = vsel %vm66, %v48, 0
    %v113 = vsel %vm66, %v49, 0
    %v116 = vsel %vm66, %v50, 0
    %v119 = vsel %vm66, %v51, 0
    %v122 = vsel %vm66, %v52, 0
    %v125 = vsel %vm66, %v53, 0
    %v128 = vsel %vm66, %v54, 0
    %v131 = vsel %vm66, %v55, 0
    %v134 = vsel %vm66, %v56, 0
    %v137 = vsel %vm66, %v57, 0
    %v140 = vsel %vm66, %v58, 0
    %v143 = vsel %vm66, %v59, 0
    %v146 = vsel %vm66, %v60, 0
    %v149 = vsel %vm66, %v61, 0
    %v152 = vsel %vm66, %v62, 0
    %v155 = vsel %vm66, %v63, 0
    %v158 = vsel %vm66, %v64, 0
    %v161 = vsel %vm66, %v65, 0
    %163 = vmatpush.xpose.msra.mxu0 %v161
    %164 = vmatpush.xpose.msra.mxu0 %v158
    %165 = vmatpush.xpose.msra.mxu0 %v155
    %166 = vmatpush.xpose.msra.mxu0 %v152
    %167 = vmatpush.xpose.msra.mxu0 %v149
    %168 = vmatpush.xpose.msra.mxu0 %v146
    %169 = vmatpush.xpose.msra.mxu0 %v143
    %170 = vmatpush.xpose.msra.mxu0 %v140
    %171 = vmatpush.xpose.msra.mxu0 %v137
    %172 = vmatpush.xpose.msra.mxu0 %v134
    %173 = vmatpush.xpose.msra.mxu0 %v131
    %174 = vmatpush.xpose.msra.mxu0 %v128
    %175 = vmatpush.xpose.msra.mxu0 %v125
    %176 = vmatpush.xpose.msra.mxu0 %v122
    %177 = vmatpush.xpose.msra.mxu0 %v119
    %178 = vmatpush.xpose.msra.mxu0 %v116
    %179 = vmatmul.f32.gmra.mxu0 %v68
    %v180 = vpop.f32.mrf.mxu0
    %v181 = vadd.f32 0.0, %v180
    %182 = vmatmul.f32.gmra.mxu0 %v71
    %v183 = vpop.f32.mrf.mxu0
    %v184 = vadd.f32 0.0, %v183
    %185 = vmatmul.f32.gmra.mxu0 %v74
    %v186 = vpop.f32.mrf.mxu0
    %v187 = vadd.f32 0.0, %v186
    %188 = vmatmul.f32.gmra.mxu0 %v77
    %v189 = vpop.f32.mrf.mxu0
    %v190 = vadd.f32 0.0, %v189
    %191 = vmatmul.f32.gmra.mxu0 %v80
    %v192 = vpop.f32.mrf.mxu0
    %v193 = vadd.f32 0.0, %v192
    %194 = vmatmul.f32.gmra.mxu0 %v83
    %v195 = vpop.f32.mrf.mxu0
    %v196 = vadd.f32 0.0, %v195
    %197 = vmatmul.f32.gmra.mxu0 %v86
    %v198 = vpop.f32.mrf.mxu0
    %v199 = vadd.f32 0.0, %v198
    %200 = vmatmul.f32.gmra.mxu0 %v89
    %v201 = vpop.f32.mrf.mxu0
    %v202 = vadd.f32 0.0, %v201
    %203 = vmatmul.f32.gmra.mxu0 %v92
    %v204 = vpop.f32.mrf.mxu0
    %v205 = vadd.f32 0.0, %v204
    %206 = vmatmul.f32.gmra.mxu0 %v95
    %v207 = vpop.f32.mrf.mxu0
    %v208 = vadd.f32 0.0, %v207
    %209 = vmatmul.f32.gmra.mxu0 %v98
    %v210 = vpop.f32.mrf.mxu0
    %v211 = vadd.f32 0.0, %v210
    %212 = vmatmul.f32.gmra.mxu0 %v101
    %v213 = vpop.f32.mrf.mxu0
    %v214 = vadd.f32 0.0, %v213
    %215 = vmatmul.f32.gmra.mxu0 %v104
    %v216 = vpop.f32.mrf.mxu0
    %v217 = vadd.f32 0.0, %v216
    %218 = vmatmul.f32.gmra.mxu0 %v107
    %v219 = vpop.f32.mrf.mxu0
    %v220 = vadd.f32 0.0, %v219
    %221 = vmatmul.f32.gmra.mxu0 %v110
    %v222 = vpop.f32.mrf.mxu0
    %v223 = vadd.f32 0.0, %v222
    %224 = vmatmul.f32.gmra.mxu0 %v113
    %v225 = vpop.f32.mrf.mxu0
    %v226 = vadd.f32 0.0, %v225
    %227 = vdwg.mxu0
    %v228 = vld [vmem:[%s3] sm:$0xff]
    %v229 = vld [vmem:[%s3 + $0x8] sm:$0xff]
    %v230 = vld [vmem:[%s3 + $0x10] sm:$0xff]
    %v231 = vld [vmem:[%s3 + $0x18] sm:$0xff]
    %v232 = vld [vmem:[%s3 + $0x20] sm:$0xff]
    %v233 = vld [vmem:[%s3 + $0x28] sm:$0xff]
    %v234 = vld [vmem:[%s3 + $0x30] sm:$0xff]
    %v235 = vld [vmem:[%s3 + $0x38] sm:$0xff]
    %v236 = vld [vmem:[%s3 + $0x40] sm:$0xff]
    %v237 = vld [vmem:[%s3 + $0x48] sm:$0xff]
    %v238 = vld [vmem:[%s3 + $0x50] sm:$0xff]
    %v239 = vld [vmem:[%s3 + $0x58] sm:$0xff]
    %v240 = vld [vmem:[%s3 + $0x60] sm:$0xff]
    %v241 = vld [vmem:[%s3 + $0x68] sm:$0xff]
    %v242 = vld [vmem:[%s3 + $0x70] sm:$0xff]
    %v243 = vld [vmem:[%s3 + $0x78] sm:$0xff]
    %v244 = vld [vmem:[%s4] sm:$0x1]
    %246 = vset.pattern.permute.xlu0 0
    %247 = vperm.xlu0 %246, %v228
    %v248 = vpop.permute.xlu0 %247
    %251 = vset.pattern.permute.xlu0 0
    %252 = vperm.xlu0 %251, %v229
    %v253 = vpop.permute.xlu0 %252
    %256 = vset.pattern.permute.xlu0 0
    %257 = vperm.xlu0 %256, %v230
    %v258 = vpop.permute.xlu0 %257
    %261 = vset.pattern.permute.xlu0 0
    %262 = vperm.xlu0 %261, %v231
    %v263 = vpop.permute.xlu0 %262
    %266 = vset.pattern.permute.xlu0 0
    %267 = vperm.xlu0 %266, %v232
    %v268 = vpop.permute.xlu0 %267
    %271 = vset.pattern.permute.xlu0 0
    %272 = vperm.xlu0 %271, %v233
    %v273 = vpop.permute.xlu0 %272
    %276 = vset.pattern.permute.xlu0 0
    %277 = vperm.xlu0 %276, %v234
    %v278 = vpop.permute.xlu0 %277
    %281 = vset.pattern.permute.xlu0 0
    %282 = vperm.xlu0 %281, %v235
    %v283 = vpop.permute.xlu0 %282
    %286 = vset.pattern.permute.xlu0 0
    %287 = vperm.xlu0 %286, %v236
    %v288 = vpop.permute.xlu0 %287
    %291 = vset.pattern.permute.xlu0 0
    %292 = vperm.xlu0 %291, %v237
    %v293 = vpop.permute.xlu0 %292
    %296 = vset.pattern.permute.xlu0 0
    %297 = vperm.xlu0 %296, %v238
    %v298 = vpop.permute.xlu0 %297
    %301 = vset.pattern.permute.xlu0 0
    %302 = vperm.xlu0 %301, %v239
    %v303 = vpop.permute.xlu0 %302
    %306 = vset.pattern.permute.xlu0 0
    %307 = vperm.xlu0 %306, %v240
    %v308 = vpop.permute.xlu0 %307
    %311 = vset.pattern.permute.xlu0 0
    %312 = vperm.xlu0 %311, %v241
    %v313 = vpop.permute.xlu0 %312
    %316 = vset.pattern.permute.xlu0 0
    %317 = vperm.xlu0 %316, %v242
    %v318 = vpop.permute.xlu0 %317
    %321 = vset.pattern.permute.xlu0 0
    %322 = vperm.xlu0 %321, %v243
    %v323 = vpop.permute.xlu0 %322
    %v326 = vperm.slane %v244, 0
    %v328 = vadd.f32 %v248, %v326
    %v329 = vadd.f32 %v253, %v326
    %v330 = vadd.f32 %v258, %v326
    %v331 = vadd.f32 %v263, %v326
    %v332 = vadd.f32 %v268, %v326
    %v333 = vadd.f32 %v273, %v326
    %v334 = vadd.f32 %v278, %v326
    %v335 = vadd.f32 %v283, %v326
    %v336 = vadd.f32 %v288, %v326
    %v337 = vadd.f32 %v293, %v326
    %v338 = vadd.f32 %v298, %v326
    %v339 = vadd.f32 %v303, %v326
    %v340 = vadd.f32 %v308, %v326
    %v341 = vadd.f32 %v313, %v326
    %v342 = vadd.f32 %v318, %v326
    %v343 = vadd.f32 %v323, %v326
    %v344 = vmul.f32 %v181, 2.0
    %v345 = vmul.f32 %v184, 2.0
    %v346 = vmul.f32 %v187, 2.0
    %v347 = vmul.f32 %v190, 2.0
    %v348 = vmul.f32 %v193, 2.0
    %v349 = vmul.f32 %v196, 2.0
    %v350 = vmul.f32 %v199, 2.0
    %v351 = vmul.f32 %v202, 2.0
    %v352 = vmul.f32 %v205, 2.0
    %v353 = vmul.f32 %v208, 2.0
    %v354 = vmul.f32 %v211, 2.0
    %v355 = vmul.f32 %v214, 2.0
    %v356 = vmul.f32 %v217, 2.0
    %v357 = vmul.f32 %v220, 2.0
    %v358 = vmul.f32 %v223, 2.0
    %v359 = vmul.f32 %v226, 2.0
    %v360 = vsub.f32 %v328, %v344
    %v361 = vsub.f32 %v329, %v345
    %v362 = vsub.f32 %v330, %v346
    %v363 = vsub.f32 %v331, %v347
    %v364 = vsub.f32 %v332, %v348
    %v365 = vsub.f32 %v333, %v349
    %v366 = vsub.f32 %v334, %v350
    %v367 = vsub.f32 %v335, %v351
    %v368 = vsub.f32 %v336, %v352
    %v369 = vsub.f32 %v337, %v353
    %v370 = vsub.f32 %v338, %v354
    %v371 = vsub.f32 %v339, %v355
    %v372 = vsub.f32 %v340, %v356
    %v373 = vsub.f32 %v341, %v357
    %v374 = vsub.f32 %v342, %v358
    %v375 = vsub.f32 %v343, %v359
    %v376 = vmax.f32 %v360, 0.0
    %v377 = vmax.f32 %v361, 0.0
    %v378 = vmax.f32 %v362, 0.0
    %v379 = vmax.f32 %v363, 0.0
    %v380 = vmax.f32 %v364, 0.0
    %v381 = vmax.f32 %v365, 0.0
    %v382 = vmax.f32 %v366, 0.0
    %v383 = vmax.f32 %v367, 0.0
    %v384 = vmax.f32 %v368, 0.0
    %v385 = vmax.f32 %v369, 0.0
    %v386 = vmax.f32 %v370, 0.0
    %v387 = vmax.f32 %v371, 0.0
    %v388 = vmax.f32 %v372, 0.0
    %v389 = vmax.f32 %v373, 0.0
    %v390 = vmax.f32 %v374, 0.0
    %v391 = vmax.f32 %v375, 0.0
    %s392 = sld [smem:[#allocation2 + $0x4]]
    %v393 = vstv %s392
    %v394 = vmul.f32 %v376, %v393
    %v395 = vmul.f32 %v377, %v393
    %v396 = vmul.f32 %v378, %v393
    %v397 = vmul.f32 %v379, %v393
    %v398 = vmul.f32 %v380, %v393
    %v399 = vmul.f32 %v381, %v393
    %v400 = vmul.f32 %v382, %v393
    %v401 = vmul.f32 %v383, %v393
    %v402 = vmul.f32 %v384, %v393
    %v403 = vmul.f32 %v385, %v393
    %v404 = vmul.f32 %v386, %v393
    %v405 = vmul.f32 %v387, %v393
    %v406 = vmul.f32 %v388, %v393
    %v407 = vmul.f32 %v389, %v393
    %v408 = vmul.f32 %v390, %v393
    %v409 = vmul.f32 %v391, %v393
    %v410 = vmul.f32 %v394, 1.442695
    %v411 = vpow.pop %v410
    %v412 = vmul.f32 %v395, 1.442695
    %v413 = vpow.pop %v412
    %v414 = vmul.f32 %v396, 1.442695
    %v415 = vpow.pop %v414
    %v416 = vmul.f32 %v397, 1.442695
    %v417 = vpow.pop %v416
    %v418 = vmul.f32 %v398, 1.442695
    %v419 = vpow.pop %v418
    %v420 = vmul.f32 %v399, 1.442695
    %v421 = vpow.pop %v420
    %v422 = vmul.f32 %v400, 1.442695
    %v423 = vpow.pop %v422
    %v424 = vmul.f32 %v401, 1.442695
    %v425 = vpow.pop %v424
    %v426 = vmul.f32 %v402, 1.442695
    %v427 = vpow.pop %v426
    %v428 = vmul.f32 %v403, 1.442695
    %v429 = vpow.pop %v428
    %v430 = vmul.f32 %v404, 1.442695
    %v431 = vpow.pop %v430
    %v432 = vmul.f32 %v405, 1.442695
    %v433 = vpow.pop %v432
    %v434 = vmul.f32 %v406, 1.442695
    %v435 = vpow.pop %v434
    %v436 = vmul.f32 %v407, 1.442695
    %v437 = vpow.pop %v436
    %v438 = vmul.f32 %v408, 1.442695
    %v439 = vpow.pop %v438
    %v440 = vmul.f32 %v409, 1.442695
    %v441 = vpow.pop %v440
    %v442 = vmul.f32 %v411, %v411
    %v443 = vmul.f32 %v413, %v413
    %v444 = vmul.f32 %v415, %v415
    %v445 = vmul.f32 %v417, %v417
    %v446 = vmul.f32 %v419, %v419
    %v447 = vmul.f32 %v421, %v421
    %v448 = vmul.f32 %v423, %v423
    %v449 = vmul.f32 %v425, %v425
    %v450 = vmul.f32 %v427, %v427
    %v451 = vmul.f32 %v429, %v429
    %v452 = vmul.f32 %v431, %v431
    %v453 = vmul.f32 %v433, %v433
    %v454 = vmul.f32 %v435, %v435
    %v455 = vmul.f32 %v437, %v437
    %v456 = vmul.f32 %v439, %v439
    %v457 = vmul.f32 %v441, %v441
    %v458 = vadd.f32 %v411, %v442
    %v459 = vadd.f32 %v413, %v443
    %v460 = vadd.f32 %v415, %v444
    %v461 = vadd.f32 %v417, %v445
    %v462 = vadd.f32 %v419, %v446
    %v463 = vadd.f32 %v421, %v447
    %v464 = vadd.f32 %v423, %v448
    %v465 = vadd.f32 %v425, %v449
    %v466 = vadd.f32 %v427, %v450
    %v467 = vadd.f32 %v429, %v451
    %v468 = vadd.f32 %v431, %v452
    %v469 = vadd.f32 %v433, %v453
    %v470 = vadd.f32 %v435, %v454
    %v471 = vadd.f32 %v437, %v455
    %v472 = vadd.f32 %v439, %v456
    %v473 = vadd.f32 %v441, %v457
    %v474 = vmul.f32 %v442, %v442
    %v475 = vmul.f32 %v443, %v443
    %v476 = vmul.f32 %v444, %v444
    %v477 = vmul.f32 %v445, %v445
    %v478 = vmul.f32 %v446, %v446
    %v479 = vmul.f32 %v447, %v447
    %v480 = vmul.f32 %v448, %v448
    %v481 = vmul.f32 %v449, %v449
    %v482 = vmul.f32 %v450, %v450
    %v483 = vmul.f32 %v451, %v451
    %v484 = vmul.f32 %v452, %v452
    %v485 = vmul.f32 %v453, %v453
    %v486 = vmul.f32 %v454, %v454
    %v487 = vmul.f32 %v455, %v455
    %v488 = vmul.f32 %v456, %v456
    %v489 = vmul.f32 %v457, %v457
    %v490 = vadd.f32 %v458, %v474
    %v491 = vadd.f32 %v459, %v475
    %v492 = vadd.f32 %v460, %v476
    %v493 = vadd.f32 %v461, %v477
    %v494 = vadd.f32 %v462, %v478
    %v495 = vadd.f32 %v463, %v479
    %v496 = vadd.f32 %v464, %v480
    %v497 = vadd.f32 %v465, %v481
    %v498 = vadd.f32 %v466, %v482
    %v499 = vadd.f32 %v467, %v483
    %v500 = vadd.f32 %v468, %v484
    %v501 = vadd.f32 %v469, %v485
    %v502 = vadd.f32 %v470, %v486
    %v503 = vadd.f32 %v471, %v487
    %v504 = vadd.f32 %v472, %v488
    %v505 = vadd.f32 %v473, %v489
    %v506 = vmul.f32 %v474, %v474
    %v507 = vmul.f32 %v475, %v475
    %v508 = vmul.f32 %v476, %v476
    %v509 = vmul.f32 %v477, %v477
    %v510 = vmul.f32 %v478, %v478
    %v511 = vmul.f32 %v479, %v479
    %v512 = vmul.f32 %v480, %v480
    %v513 = vmul.f32 %v481, %v481
    %v514 = vmul.f32 %v482, %v482
    %v515 = vmul.f32 %v483, %v483
    %v516 = vmul.f32 %v484, %v484
    %v517 = vmul.f32 %v485, %v485
    %v518 = vmul.f32 %v486, %v486
    %v519 = vmul.f32 %v487, %v487
    %v520 = vmul.f32 %v488, %v488
    %v521 = vmul.f32 %v489, %v489
    %v522 = vadd.f32 %v490, %v506
    %v523 = vadd.f32 %v491, %v507
    %v524 = vadd.f32 %v492, %v508
    %v525 = vadd.f32 %v493, %v509
    %v526 = vadd.f32 %v494, %v510
    %v527 = vadd.f32 %v495, %v511
    %v528 = vadd.f32 %v496, %v512
    %v529 = vadd.f32 %v497, %v513
    %v530 = vadd.f32 %v498, %v514
    %v531 = vadd.f32 %v499, %v515
    %v532 = vadd.f32 %v500, %v516
    %v533 = vadd.f32 %v501, %v517
    %v534 = vadd.f32 %v502, %v518
    %v535 = vadd.f32 %v503, %v519
    %v536 = vadd.f32 %v504, %v520
    %v537 = vadd.f32 %v505, %v521
    %v538 = vmul.f32 %v506, %v506
    %v539 = vmul.f32 %v507, %v507
    %v540 = vmul.f32 %v508, %v508
    %v541 = vmul.f32 %v509, %v509
    %v542 = vmul.f32 %v510, %v510
    %v543 = vmul.f32 %v511, %v511
    %v544 = vmul.f32 %v512, %v512
    %v545 = vmul.f32 %v513, %v513
    %v546 = vmul.f32 %v514, %v514
    %v547 = vmul.f32 %v515, %v515
    %v548 = vmul.f32 %v516, %v516
    %v549 = vmul.f32 %v517, %v517
    %v550 = vmul.f32 %v518, %v518
    %v551 = vmul.f32 %v519, %v519
    %v552 = vmul.f32 %v520, %v520
    %v553 = vmul.f32 %v521, %v521
    %v554 = vadd.f32 %v522, %v538
    %v555 = vadd.f32 %v523, %v539
    %v556 = vadd.f32 %v524, %v540
    %v557 = vadd.f32 %v525, %v541
    %v558 = vadd.f32 %v526, %v542
    %v559 = vadd.f32 %v527, %v543
    %v560 = vadd.f32 %v528, %v544
    %v561 = vadd.f32 %v529, %v545
    %v562 = vadd.f32 %v530, %v546
    %v563 = vadd.f32 %v531, %v547
    %v564 = vadd.f32 %v532, %v548
    %v565 = vadd.f32 %v533, %v549
    %v566 = vadd.f32 %v534, %v550
    %v567 = vadd.f32 %v535, %v551
    %v568 = vadd.f32 %v536, %v552
    %v569 = vadd.f32 %v537, %v553
    %570 = vst [vmem:[#allocation5] sm:$0xff] %v554
    %571 = vst [vmem:[#allocation5 + $0x8] sm:$0xff] %v555
    %572 = vst [vmem:[#allocation5 + $0x10] sm:$0xff] %v556
    %573 = vst [vmem:[#allocation5 + $0x18] sm:$0xff] %v557
    %574 = vst [vmem:[#allocation5 + $0x20] sm:$0xff] %v558
    %575 = vst [vmem:[#allocation5 + $0x28] sm:$0xff] %v559
    %576 = vst [vmem:[#allocation5 + $0x30] sm:$0xff] %v560
    %577 = vst [vmem:[#allocation5 + $0x38] sm:$0xff] %v561
    %578 = vst [vmem:[#allocation5 + $0x40] sm:$0xff] %v562
    %579 = vst [vmem:[#allocation5 + $0x48] sm:$0xff] %v563
    %580 = vst [vmem:[#allocation5 + $0x50] sm:$0xff] %v564
    %581 = vst [vmem:[#allocation5 + $0x58] sm:$0xff] %v565
    %582 = vst [vmem:[#allocation5 + $0x60] sm:$0xff] %v566
    %583 = vst [vmem:[#allocation5 + $0x68] sm:$0xff] %v567
    %584 = vst [vmem:[#allocation5 + $0x70] sm:$0xff] %v568
    %585 = vst [vmem:[#allocation5 + $0x78] sm:$0xff] %v569
    // Predicated region
    $region26: #{tpu_custom_call.1} parent=1 // pred_check
      _
    $region27: #{tpu_custom_call.1} parent=1 // pred_check_branch
      %587 = sbr.rel (0) target = $region29
    $region28: #{tpu_custom_call.1} parent=1 // pred_region
      %589 = vsyncadd [#allocation3], 0
      %s590 = sshll.u32 [#allocation5], 4
      %s591 = int_to_ptr.vmem [resolvable:$true] %s590
      %s592 = sshll.u32 %s5, 4
      %s593 = int_to_ptr.hbm [resolvable:$true] %s592
      %598 = dma.vmem_to_hbm [thread:$0]  %s591, 2048, %s593, [#allocation3], 128, 128, 8
    $region29: #{tpu_custom_call.1} parent=1 // pred_fallthru
      _
    // Predicated region
    $region30: #{tpu_custom_call.1} parent=1 // pred_check
      _
    $region31: #{tpu_custom_call.1} parent=1 // pred_check_branch
      %600 = sbr.rel (0) target = $region33
    $region32: #{tpu_custom_call.1} parent=1 // pred_region
      %602 = dma.done [#allocation3], 2048
    $region33: #{tpu_custom_call.1} parent=1 // pred_fallthru
      _
    %603 = vsyncpa [#allocation3], 1
    %604 = vsyncpa [#allocation4], 1

</llo_original>
